<compile_context>
chip_gen: v6e
topology: v6e:2x2x1
jax: 0.10.0
libtpu: 0.0.40
codegen_flags: <defaults>
</compile_context>

<pallas_src>
import functools
import math

import jax
import jax.numpy as jnp
from jax.experimental import pallas as pl
from jax.experimental.pallas import tpu as pltpu

_LANE = 128          # lane width: feature dims padded to multiples of this
_SUBLANE = 8         # f32 sublane granularity for the batch tile
_MAX_BATCH_TILE = 512


def _round_up(x, m):
    return (x + m - 1) // m * m


# --------------------------------------------------------------------------- kernel
def _mlp_kernel(x_ref, *refs):
    """refs = (w0, b0, w1, b1, ..., wL, bL, out_ref).

    Computes h = relu(h @ W_i + b_i) for all layers except the last (no
    nonlinearity after output_layer, matching the torch Sequential).
    Matmuls accumulate in f32 on the MXU; operands are fed in the weight dtype.
    """
    out_ref = refs[-1]
    param_refs = refs[:-1]
    n_lin = len(param_refs) // 2

    h = x_ref[...]
    for i in range(n_lin):
        w = param_refs[2 * i][...]
        b = param_refs[2 * i + 1][...]
        h = jnp.dot(h.astype(w.dtype), w, preferred_element_type=jnp.float32)
        h = h + b.astype(jnp.float32)
        if i < n_lin - 1:
            h = jnp.maximum(h, 0.0)
    out_ref[...] = h.astype(out_ref.dtype)


# ----------------------------------------------------------------------- parameters
def init_mlp_gaussian_params(key, dim_in, dim_h, dim_out, num_layers,
                             dtype=jnp.float32):
    """Mirrors torch.nn.Linear default init: U(-1/sqrt(fan_in), 1/sqrt(fan_in)).
    Weights are stored as [fan_in, fan_out] (transposed vs torch)."""
    dims = [(dim_in, dim_h)] + [(dim_h, dim_h)] * num_layers + [(dim_h, dim_out)]
    params = []
    for (fan_in, fan_out) in dims:
        key, kw, kb = jax.random.split(key, 3)
        bound = 1.0 / math.sqrt(fan_in)
        w = jax.random.uniform(kw, (fan_in, fan_out), dtype, minval=-bound, maxval=bound)
        b = jax.random.uniform(kb, (fan_out,), dtype, minval=-bound, maxval=bound)
        params.append((w, b))
    return params


def _pad_params(params):
    """Zero-pad every layer's fan_out (and the matching fan_in of the next layer)
    up to a multiple of 128 so all MXU tiles and output stores are lane-dense.
    Zero padding is exact: padded activations stay 0 through Linear+ReLU."""
    padded = []
    prev_out_pad = params[0][0].shape[0]  # dim_in stays unpadded (full-array block)
    for (w, b) in params:
        fan_in, fan_out = w.shape
        fan_out_pad = _round_up(fan_out, _LANE)
        w_p = jnp.zeros((prev_out_pad, fan_out_pad), w.dtype).at[:fan_in, :fan_out].set(w)
        b_p = jnp.zeros((1, fan_out_pad), b.dtype).at[0, :fan_out].set(b)
        padded.append((w_p, b_p))
        prev_out_pad = fan_out_pad
    return padded


# -------------------------------------------------------------------------- forward
@jax.jit
def _mlp_gaussian_forward(obs, *flat_params):
    """obs: [batch, dim_in]; flat_params = (w0, b0_row, w1, b1_row, ...), padded."""
    batch, dim_in = obs.shape
    out_pad = flat_params[-2].shape[1]

    # Batch tiling: multiple of 8 sublanes, capped, then pad batch to a tile multiple.
    batch_pad = _round_up(batch, _SUBLANE)
    tb = min(_MAX_BATCH_TILE, batch_pad)
    batch_pad = _round_up(batch_pad, tb)
    if batch_pad != batch:
        obs = jnp.pad(obs, ((0, batch_pad - batch), (0, 0)))
    grid = (batch_pad // tb,)

    # Weights / biases: whole-array blocks, VMEM-resident across all batch tiles.
    param_specs = [pl.BlockSpec(p.shape, lambda i: (0, 0)) for p in flat_params]

    # VMEM budget: resident params + double-buffered in/out tiles + activations, +30%.
    param_bytes = sum(int(p.shape[0]) * int(p.shape[1]) * p.dtype.itemsize
                      for p in flat_params)
    max_feat = max(int(w.shape[1]) for w in flat_params[0::2])
    act_bytes = 4 * tb * max(dim_in, max_feat, out_pad) * 4
    io_bytes = 2 * 2 * (tb * dim_in + tb * out_pad) * 4
    vmem_limit = int(min(max((param_bytes + io_bytes + act_bytes) * 1.3, 32 << 20),
                         64 << 20))

    flops = 2 * batch_pad * sum(int(w.shape[0]) * int(w.shape[1])
                                for w in flat_params[0::2])
    bytes_accessed = param_bytes + (batch_pad * dim_in + batch_pad * out_pad) * 4

    return pl.pallas_call(
        _mlp_kernel,
        out_shape=jax.ShapeDtypeStruct((batch_pad, out_pad), obs.dtype),
        grid=grid,
        in_specs=[pl.BlockSpec((tb, dim_in), lambda i: (i, 0))] + param_specs,
        out_specs=pl.BlockSpec((tb, out_pad), lambda i: (i, 0)),
        compiler_params=pltpu.CompilerParams(
            dimension_semantics=("parallel",),
            vmem_limit_bytes=vmem_limit),
        cost_estimate=pl.CostEstimate(
            flops=flops, transcendentals=0, bytes_accessed=bytes_accessed),
    )(obs, *flat_params)


def mlp_gaussian_apply(obs, params):
    """Public entry: pads params/batch, runs the kernel, slices back to true shape."""
    dim_out = params[-1][0].shape[1]
    padded = _pad_params(params)
    flat = []
    for w, b in padded:
        flat.append(w)
        flat.append(b)
    out = _mlp_gaussian_forward(obs, *flat)
    return out[:obs.shape[0], :dim_out]


# ------------------------------------------------------------------------- reference
def _reference_forward(obs, params):
    h = obs
    n = len(params)
    for i, (w, b) in enumerate(params):
        h = h @ w + b
        if i < n - 1:
            h = jnp.maximum(h, 0.0)
    return h


if __name__ == "__main__":
    # Small, module-consistent shapes.
    dim_in, dim_h, dim_out, num_layers = 16, 32, 8, 2
    batch = 8
    motor_bounds = (-1.0, 1.0)  # stored-only attribute in torch module; unused in forward

    key = jax.random.PRNGKey(0)
    k_params, k_obs = jax.random.split(key)
    params = init_mlp_gaussian_params(k_params, dim_in, dim_h, dim_out, num_layers)
    obs = jax.random.normal(k_obs, (batch, dim_in), jnp.float32)

    out = jax.block_until_ready(mlp_gaussian_apply(obs, params))
    ref = jax.block_until_ready(_reference_forward(obs, params))

    assert out.shape == (batch, dim_out)
    assert jnp.allclose(out, ref, atol=1e-5, rtol=1e-5)

    print("KERNEL_OK")
</pallas_src>

<mosaic_0001>
module attributes {stable_mosaic.version = 11 : i64} {
  func.func @_mlp_kernel(%arg0: i32, %arg1: memref<8x16xf32, #tpu.memory_space<vmem>>, %arg2: memref<16x128xf32, #tpu.memory_space<vmem>>, %arg3: memref<1x128xf32, #tpu.memory_space<vmem>>, %arg4: memref<128x128xf32, #tpu.memory_space<vmem>>, %arg5: memref<1x128xf32, #tpu.memory_space<vmem>>, %arg6: memref<128x128xf32, #tpu.memory_space<vmem>>, %arg7: memref<1x128xf32, #tpu.memory_space<vmem>>, %arg8: memref<128x128xf32, #tpu.memory_space<vmem>>, %arg9: memref<1x128xf32, #tpu.memory_space<vmem>>, %arg10: memref<8x128xf32, #tpu.memory_space<vmem>>) attributes {dimension_semantics = [#tpu.dimension_semantics<parallel>], iteration_bounds = array<i64: 1>, scalar_prefetch = 0 : i64, scratch_operands = 0 : i64, tpu.core_type = #tpu.core_type<tc>, window_params = [{transform_indices = @transform_0, window_bounds = array<i64: 8, 16>}, {pipeline_mode = #tpu.pipeline_mode<synchronous>, transform_indices = @transform_1, window_bounds = array<i64: 16, 128>}, {pipeline_mode = #tpu.pipeline_mode<synchronous>, transform_indices = @transform_2, window_bounds = array<i64: 1, 128>}, {pipeline_mode = #tpu.pipeline_mode<synchronous>, transform_indices = @transform_3, window_bounds = array<i64: 128, 128>}, {pipeline_mode = #tpu.pipeline_mode<synchronous>, transform_indices = @transform_4, window_bounds = array<i64: 1, 128>}, {pipeline_mode = #tpu.pipeline_mode<synchronous>, transform_indices = @transform_5, window_bounds = array<i64: 128, 128>}, {pipeline_mode = #tpu.pipeline_mode<synchronous>, transform_indices = @transform_6, window_bounds = array<i64: 1, 128>}, {pipeline_mode = #tpu.pipeline_mode<synchronous>, transform_indices = @transform_7, window_bounds = array<i64: 128, 128>}, {pipeline_mode = #tpu.pipeline_mode<synchronous>, transform_indices = @transform_8, window_bounds = array<i64: 1, 128>}, {transform_indices = @transform_9, window_bounds = array<i64: 8, 128>}]} {
    %c0 = arith.constant 0 : index
    %c0_0 = arith.constant 0 : index
    %0 = vector.load %arg1[%c0, %c0_0] : memref<8x16xf32, #tpu.memory_space<vmem>>, vector<8x16xf32>
    %c0_1 = arith.constant 0 : index
    %c0_2 = arith.constant 0 : index
    %1 = vector.load %arg2[%c0_1, %c0_2] : memref<16x128xf32, #tpu.memory_space<vmem>>, vector<16x128xf32>
    %c0_3 = arith.constant 0 : index
    %c0_4 = arith.constant 0 : index
    %2 = vector.load %arg3[%c0_3, %c0_4] : memref<1x128xf32, #tpu.memory_space<vmem>>, vector<1x128xf32>
    %cst = arith.constant dense<0.000000e+00> : vector<8x128xf32>
    %3 = tpu.matmul %0, %1, %cst {dimension_numbers = #tpu.dot_dimension_numbers<[1], [0], [0], [1], [0, 0, 1, 1], [], []>} : vector<8x16xf32>, vector<16x128xf32>, vector<8x128xf32> -> vector<8x128xf32>
    %4 = vector.broadcast %2 : vector<1x128xf32> to vector<8x128xf32>
    %5 = arith.addf %3, %4 : vector<8x128xf32>
    %cst_5 = arith.constant 0.000000e+00 : f32
    %6 = vector.broadcast %cst_5 : f32 to vector<8x128xf32>
    %7 = arith.maximumf %5, %6 : vector<8x128xf32>
    %c0_6 = arith.constant 0 : index
    %c0_7 = arith.constant 0 : index
    %8 = vector.load %arg4[%c0_6, %c0_7] : memref<128x128xf32, #tpu.memory_space<vmem>>, vector<128x128xf32>
    %c0_8 = arith.constant 0 : index
    %c0_9 = arith.constant 0 : index
    %9 = vector.load %arg5[%c0_8, %c0_9] : memref<1x128xf32, #tpu.memory_space<vmem>>, vector<1x128xf32>
    %cst_10 = arith.constant dense<0.000000e+00> : vector<8x128xf32>
    %10 = tpu.matmul %7, %8, %cst_10 {dimension_numbers = #tpu.dot_dimension_numbers<[1], [0], [0], [1], [0, 0, 1, 1], [], []>} : vector<8x128xf32>, vector<128x128xf32>, vector<8x128xf32> -> vector<8x128xf32>
    %11 = vector.broadcast %9 : vector<1x128xf32> to vector<8x128xf32>
    %12 = arith.addf %10, %11 : vector<8x128xf32>
    %cst_11 = arith.constant 0.000000e+00 : f32
    %13 = vector.broadcast %cst_11 : f32 to vector<8x128xf32>
    %14 = arith.maximumf %12, %13 : vector<8x128xf32>
    %c0_12 = arith.constant 0 : index
    %c0_13 = arith.constant 0 : index
    %15 = vector.load %arg6[%c0_12, %c0_13] : memref<128x128xf32, #tpu.memory_space<vmem>>, vector<128x128xf32>
    %c0_14 = arith.constant 0 : index
    %c0_15 = arith.constant 0 : index
    %16 = vector.load %arg7[%c0_14, %c0_15] : memref<1x128xf32, #tpu.memory_space<vmem>>, vector<1x128xf32>
    %cst_16 = arith.constant dense<0.000000e+00> : vector<8x128xf32>
    %17 = tpu.matmul %14, %15, %cst_16 {dimension_numbers = #tpu.dot_dimension_numbers<[1], [0], [0], [1], [0, 0, 1, 1], [], []>} : vector<8x128xf32>, vector<128x128xf32>, vector<8x128xf32> -> vector<8x128xf32>
    %18 = vector.broadcast %16 : vector<1x128xf32> to vector<8x128xf32>
    %19 = arith.addf %17, %18 : vector<8x128xf32>
    %cst_17 = arith.constant 0.000000e+00 : f32
    %20 = vector.broadcast %cst_17 : f32 to vector<8x128xf32>
    %21 = arith.maximumf %19, %20 : vector<8x128xf32>
    %c0_18 = arith.constant 0 : index
    %c0_19 = arith.constant 0 : index
    %22 = vector.load %arg8[%c0_18, %c0_19] : memref<128x128xf32, #tpu.memory_space<vmem>>, vector<128x128xf32>
    %c0_20 = arith.constant 0 : index
    %c0_21 = arith.constant 0 : index
    %23 = vector.load %arg9[%c0_20, %c0_21] : memref<1x128xf32, #tpu.memory_space<vmem>>, vector<1x128xf32>
    %cst_22 = arith.constant dense<0.000000e+00> : vector<8x128xf32>
    %24 = tpu.matmul %21, %22, %cst_22 {dimension_numbers = #tpu.dot_dimension_numbers<[1], [0], [0], [1], [0, 0, 1, 1], [], []>} : vector<8x128xf32>, vector<128x128xf32>, vector<8x128xf32> -> vector<8x128xf32>
    %25 = vector.broadcast %23 : vector<1x128xf32> to vector<8x128xf32>
    %26 = arith.addf %24, %25 : vector<8x128xf32>
    %c0_23 = arith.constant 0 : index
    %c0_24 = arith.constant 0 : index
    %27 = vector.load %arg10[%c0_23, %c0_24] : memref<8x128xf32, #tpu.memory_space<vmem>>, vector<8x128xf32>
    tpu.vector_store %arg10[%c0_23, %c0_24], %26 {strides = array<i32>} : memref<8x128xf32, #tpu.memory_space<vmem>>, vector<8x128xf32>,
    return
  }
  func.func @transform_0(%arg0: i32) -> (i32, i32) {
    %c0_i32 = arith.constant 0 : i32
    %c0_i32_0 = arith.constant 0 : i32
    return %arg0, %c0_i32 : i32, i32
  }
  func.func @transform_1(%arg0: i32) -> (i32, i32) {
    %c0_i32 = arith.constant 0 : i32
    %c0_i32_0 = arith.constant 0 : i32
    %c0_i32_1 = arith.constant 0 : i32
    return %c0_i32, %c0_i32_0 : i32, i32
  }
  func.func @transform_2(%arg0: i32) -> (i32, i32) {
    %c0_i32 = arith.constant 0 : i32
    %c0_i32_0 = arith.constant 0 : i32
    %c0_i32_1 = arith.constant 0 : i32
    return %c0_i32, %c0_i32_0 : i32, i32
  }
  func.func @transform_3(%arg0: i32) -> (i32, i32) {
    %c0_i32 = arith.constant 0 : i32
    %c0_i32_0 = arith.constant 0 : i32
    %c0_i32_1 = arith.constant 0 : i32
    return %c0_i32, %c0_i32_0 : i32, i32
  }
  func.func @transform_4(%arg0: i32) -> (i32, i32) {
    %c0_i32 = arith.constant 0 : i32
    %c0_i32_0 = arith.constant 0 : i32
    %c0_i32_1 = arith.constant 0 : i32
    return %c0_i32, %c0_i32_0 : i32, i32
  }
  func.func @transform_5(%arg0: i32) -> (i32, i32) {
    %c0_i32 = arith.constant 0 : i32
    %c0_i32_0 = arith.constant 0 : i32
    %c0_i32_1 = arith.constant 0 : i32
    return %c0_i32, %c0_i32_0 : i32, i32
  }
  func.func @transform_6(%arg0: i32) -> (i32, i32) {
    %c0_i32 = arith.constant 0 : i32
    %c0_i32_0 = arith.constant 0 : i32
    %c0_i32_1 = arith.constant 0 : i32
    return %c0_i32, %c0_i32_0 : i32, i32
  }
  func.func @transform_7(%arg0: i32) -> (i32, i32) {
    %c0_i32 = arith.constant 0 : i32
    %c0_i32_0 = arith.constant 0 : i32
    %c0_i32_1 = arith.constant 0 : i32
    return %c0_i32, %c0_i32_0 : i32, i32
  }
  func.func @transform_8(%arg0: i32) -> (i32, i32) {
    %c0_i32 = arith.constant 0 : i32
    %c0_i32_0 = arith.constant 0 : i32
    %c0_i32_1 = arith.constant 0 : i32
    return %c0_i32, %c0_i32_0 : i32, i32
  }
  func.func @transform_9(%arg0: i32) -> (i32, i32) {
    %c0_i32 = arith.constant 0 : i32
    %c0_i32_0 = arith.constant 0 : i32
    return %arg0, %c0_i32 : i32, i32
  }
}

</mosaic_0001>

<llo_original>
// kernel: _mlp_gaussian_forward.1
$region0: #{_mlp_gaussian_forward.1}
  #allocation0 [shape = 'u32[]', space=smem, size = 0x4, offset = 0x4, fixed_abs, tag = 'smem constant byte address 0x4 - core index']
  #allocation1 [shape = 'u32[144,128]{1,0:T(1,128)}', space=vmem, size = 0x12000, scoped, tag = 'internal scratch']
  %s0 = inlined_call_operand.hbm [shape: f32[8,16], index: 0, kind: input, shape index: {}]
  %s1 = inlined_call_operand.hbm [shape: f32[16,128], index: 1, kind: input, shape index: {}]
  %s2 = inlined_call_operand.vmem [shape: f32[1,128], index: 2, kind: input, shape index: {}]
  %s3 = inlined_call_operand.hbm [shape: f32[128,128], index: 3, kind: input, shape index: {}]
  %s4 = inlined_call_operand.vmem [shape: f32[1,128], index: 4, kind: input, shape index: {}]
  %s5 = inlined_call_operand.hbm [shape: f32[128,128], index: 5, kind: input, shape index: {}]
  %s6 = inlined_call_operand.vmem [shape: f32[1,128], index: 6, kind: input, shape index: {}]
  %s7 = inlined_call_operand.hbm [shape: f32[128,128], index: 7, kind: input, shape index: {}]
  %s8 = inlined_call_operand.vmem [shape: f32[1,128], index: 8, kind: input, shape index: {}]
  %s9 = inlined_call_operand.hbm [shape: f32[8,128], index: 9, kind: output, shape index: {}]
  %s10 = sld [smem:[#allocation0]]
  $region66: #{_mlp_gaussian_forward.1} parent=0
    _
  %s12 = ssub.s32 1, %s10
  %s13 = scalar_select 0, %s12, %s10
  $region1: #{_mlp_gaussian_forward.1} parent=0
    #allocation2 [shape = 'u8[4096]{0}', space=vmem, size = 0x1000, scoped, tag = 'input window, operand 0, single buffered']
    #allocation3 [shape = 's32[1]{0}', space=sflag, size = 0x4, scoped, tag = 'scoped memory for _mlp_gaussian_forward.1']
    #allocation4 [shape = 's32[1]{0}', space=sflag, size = 0x4, scoped, tag = 'scoped memory for _mlp_gaussian_forward.1']
    #allocation5 [shape = 'u8[8192]{0}', space=vmem, size = 0x2000, scoped, tag = 'input window, operand 1, single buffered']
    #allocation6 [shape = 's32[1]{0}', space=sflag, size = 0x4, scoped, tag = 'scoped memory for _mlp_gaussian_forward.1']
    #allocation7 [shape = 'u8[65536]{0}', space=vmem, size = 0x10000, scoped, tag = 'input window, operand 3, single buffered']
    #allocation8 [shape = 'u8[65536]{0}', space=vmem, size = 0x10000, scoped, tag = 'input window, operand 5, single buffered']
    #allocation9 [shape = 's32[1]{0}', space=sflag, size = 0x4, scoped, tag = 'scoped memory for _mlp_gaussian_forward.1']
    #allocation10 [shape = 'u8[65536]{0}', space=vmem, size = 0x10000, scoped, tag = 'input window, operand 7, single buffered']
    #allocation11 [shape = 'u8[4096]{0}', space=vmem, size = 0x1000, scoped, tag = 'output window, operand 0, single buffered']
    %14 = vsyncpa [#allocation3], 0
    %15 = vsyncpa [#allocation6], 0
    %16 = vsyncpa [#allocation9], 0
    %17 = vsyncpa [#allocation4], 0
    // Predicated region
    $region2: #{_mlp_gaussian_forward.1} parent=1 // pred_check
      _
    $region3: #{_mlp_gaussian_forward.1} parent=1 // pred_check_branch
      %19 = sbr.rel (0) target = $region5
    $region4: #{_mlp_gaussian_forward.1} parent=1 // pred_region
      %s21 = ssub.s32 128, 128
      %22 = vsyncadd [#allocation3], %s21
      %s24 = sshll.u32 [#allocation2], 4
      %s25 = int_to_ptr.vmem [resolvable:$true] %s24
      %27 = dma.hbm_to_vmem [thread:$0]  %s0, 128, %s25, [#allocation3]
    $region5: #{_mlp_gaussian_forward.1} parent=1 // pred_fallthru
      _
    // Predicated region
    $region6: #{_mlp_gaussian_forward.1} parent=1 // pred_check
      _
    $region7: #{_mlp_gaussian_forward.1} parent=1 // pred_check_branch
      %29 = sbr.rel (0) target = $region9
    $region8: #{_mlp_gaussian_forward.1} parent=1 // pred_region
      %s31 = ssub.s32 256, 256
      %32 = vsyncadd [#allocation6], %s31
      %s33 = sshll.u32 [#allocation5], 4
      %s34 = int_to_ptr.vmem [resolvable:$true] %s33
      %39 = dma.hbm_to_vmem [thread:$0]  %s1, 256, %s34, [#allocation6], 128, 128, 8
    $region9: #{_mlp_gaussian_forward.1} parent=1 // pred_fallthru
      _
    // Predicated region
    $region10: #{_mlp_gaussian_forward.1} parent=1 // pred_check
      _
    $region11: #{_mlp_gaussian_forward.1} parent=1 // pred_check_branch
      %41 = sbr.rel (0) target = $region13
    $region12: #{_mlp_gaussian_forward.1} parent=1 // pred_region
      _
    $region13: #{_mlp_gaussian_forward.1} parent=1 // pred_fallthru
      _
    // Predicated region
    $region14: #{_mlp_gaussian_forward.1} parent=1 // pred_check
      _
    $region15: #{_mlp_gaussian_forward.1} parent=1 // pred_check_branch
      %43 = sbr.rel (0) target = $region17
    $region16: #{_mlp_gaussian_forward.1} parent=1 // pred_region
      %s45 = ssub.s32 2048, 2048
      %46 = vsyncadd [#allocation6], %s45
      %s47 = sshll.u32 [#allocation7], 4
      %s48 = int_to_ptr.vmem [resolvable:$true] %s47
      %53 = dma.hbm_to_vmem [thread:$0]  %s3, 2048, %s48, [#allocation6], 128, 128, 8
    $region17: #{_mlp_gaussian_forward.1} parent=1 // pred_fallthru
      _
    // Predicated region
    $region18: #{_mlp_gaussian_forward.1} parent=1 // pred_check
      _
    $region19: #{_mlp_gaussian_forward.1} parent=1 // pred_check_branch
      %55 = sbr.rel (0) target = $region21
    $region20: #{_mlp_gaussian_forward.1} parent=1 // pred_region
      _
    $region21: #{_mlp_gaussian_forward.1} parent=1 // pred_fallthru
      _
    // Predicated region
    $region22: #{_mlp_gaussian_forward.1} parent=1 // pred_check
      _
    $region23: #{_mlp_gaussian_forward.1} parent=1 // pred_check_branch
      %57 = sbr.rel (0) target = $region25
    $region24: #{_mlp_gaussian_forward.1} parent=1 // pred_region
      %s59 = ssub.s32 2048, 2048
      %60 = vsyncadd [#allocation9], %s59
      %s61 = sshll.u32 [#allocation8], 4
      %s62 = int_to_ptr.vmem [resolvable:$true] %s61
      %67 = dma.hbm_to_vmem [thread:$0]  %s5, 2048, %s62, [#allocation9], 128, 128, 8
    $region25: #{_mlp_gaussian_forward.1} parent=1 // pred_fallthru
      _
    // Predicated region
    $region26: #{_mlp_gaussian_forward.1} parent=1 // pred_check
      _
    $region27: #{_mlp_gaussian_forward.1} parent=1 // pred_check_branch
      %69 = sbr.rel (0) target = $region29
    $region28: #{_mlp_gaussian_forward.1} parent=1 // pred_region
      _
    $region29: #{_mlp_gaussian_forward.1} parent=1 // pred_fallthru
      _
    // Predicated region
    $region30: #{_mlp_gaussian_forward.1} parent=1 // pred_check
      _
    $region31: #{_mlp_gaussian_forward.1} parent=1 // pred_check_branch
      %71 = sbr.rel (0) target = $region33
    $region32: #{_mlp_gaussian_forward.1} parent=1 // pred_region
      %s73 = ssub.s32 2048, 2048
      %74 = vsyncadd [#allocation9], %s73
      %s75 = sshll.u32 [#allocation10], 4
      %s76 = int_to_ptr.vmem [resolvable:$true] %s75
      %81 = dma.hbm_to_vmem [thread:$0]  %s7, 2048, %s76, [#allocation9], 128, 128, 8
    $region33: #{_mlp_gaussian_forward.1} parent=1 // pred_fallthru
      _
    // Predicated region
    $region34: #{_mlp_gaussian_forward.1} parent=1 // pred_check
      _
    $region35: #{_mlp_gaussian_forward.1} parent=1 // pred_check_branch
      %83 = sbr.rel (0) target = $region37
    $region36: #{_mlp_gaussian_forward.1} parent=1 // pred_region
      _
    $region37: #{_mlp_gaussian_forward.1} parent=1 // pred_fallthru
      _
    // Predicated region
    $region38: #{_mlp_gaussian_forward.1} parent=1 // pred_check
      _
    $region39: #{_mlp_gaussian_forward.1} parent=1 // pred_check_branch
      %85 = sbr.rel (0) target = $region41
    $region40: #{_mlp_gaussian_forward.1} parent=1 // pred_region
      %86 = dma.done [#allocation3], 128
    $region41: #{_mlp_gaussian_forward.1} parent=1 // pred_fallthru
      _
    // Predicated region
    $region42: #{_mlp_gaussian_forward.1} parent=1 // pred_check
      _
    $region43: #{_mlp_gaussian_forward.1} parent=1 // pred_check_branch
      %88 = sbr.rel (0) target = $region45
    $region44: #{_mlp_gaussian_forward.1} parent=1 // pred_region
      %89 = dma.done [#allocation6], 256
    $region45: #{_mlp_gaussian_forward.1} parent=1 // pred_fallthru
      _
    // Predicated region
    $region46: #{_mlp_gaussian_forward.1} parent=1 // pred_check
      _
    $region47: #{_mlp_gaussian_forward.1} parent=1 // pred_check_branch
      %91 = sbr.rel (0) target = $region49
    $region48: #{_mlp_gaussian_forward.1} parent=1 // pred_region
      %92 = dma.done [#allocation6], 2048
    $region49: #{_mlp_gaussian_forward.1} parent=1 // pred_fallthru
      _
    // Predicated region
    $region50: #{_mlp_gaussian_forward.1} parent=1 // pred_check
      _
    $region51: #{_mlp_gaussian_forward.1} parent=1 // pred_check_branch
      %94 = sbr.rel (0) target = $region53
    $region52: #{_mlp_gaussian_forward.1} parent=1 // pred_region
      %95 = dma.done [#allocation9], 2048
    $region53: #{_mlp_gaussian_forward.1} parent=1 // pred_fallthru
      _
    // Predicated region
    $region54: #{_mlp_gaussian_forward.1} parent=1 // pred_check
      _
    $region55: #{_mlp_gaussian_forward.1} parent=1 // pred_check_branch
      %97 = sbr.rel (0) target = $region57
    $region56: #{_mlp_gaussian_forward.1} parent=1 // pred_region
      %98 = dma.done [#allocation9], 2048
    $region57: #{_mlp_gaussian_forward.1} parent=1 // pred_fallthru
      _
    %v99 = vld [vmem:[#allocation2] sm:$0xff]
    %v100 = vld [vmem:[#allocation5] sm:$0xff]
    %v101 = vld [vmem:[#allocation5 + $0x8] sm:$0xff]
    %v102 = vld [vmem:[%s2] sm:$0x1]
    %v104 = vlaneseq
    %v105 = vshrl.u32 %v104, 7
    %v106 = vsub.s32 0, %v105
    %v107 = vrot.slane %v102, %v106
    %vm109 = vcmask 130048
    %v111 = vsel %vm109, %v99, 0
    %113 = vmatprep.subr.mxu0 0.0
    %114 = vmatpush1.msra.mxu0 0.0
    %115 = vmatprep.subr.mxu0 0.0
    %116 = vmatpush1.msra.mxu0 0.0
    %117 = vmatprep.subr.mxu0 0.0
    %118 = vmatpush1.msra.mxu0 0.0
    %119 = vmatprep.subr.mxu0 0.0
    %120 = vmatpush1.msra.mxu0 0.0
    %121 = vmatprep.subr.mxu0 0.0
    %122 = vmatpush1.msra.mxu0 0.0
    %123 = vmatprep.subr.mxu0 0.0
    %124 = vmatpush1.msra.mxu0 0.0
    %125 = vmatprep.subr.mxu0 0.0
    %126 = vmatpush1.msra.mxu0 0.0
    %127 = vmatprep.subr.mxu0 0.0
    %128 = vmatpush1.msra.mxu0 0.0
    %129 = vmatprep.subr.mxu0 0.0
    %130 = vmatpush1.msra.mxu0 0.0
    %131 = vmatprep.subr.mxu0 0.0
    %132 = vmatpush1.msra.mxu0 0.0
    %133 = vmatprep.subr.mxu0 0.0
    %134 = vmatpush1.msra.mxu0 0.0
    %135 = vmatprep.subr.mxu0 0.0
    %136 = vmatpush1.msra.mxu0 0.0
    %137 = vmatprep.subr.mxu0 0.0
    %138 = vmatpush1.msra.mxu0 0.0
    %139 = vmatprep.subr.mxu0 0.0
    %140 = vmatpush1.msra.mxu0 0.0
    %141 = vmatprep.subr.mxu0 0.0
    %142 = vmatpush1.msra.mxu0 %v101
    %143 = vmatprep.subr.mxu0 0.0
    %144 = vmatpush1.msra.mxu0 %v100
    %145 = vmatprep.subr.mxu0 0.0
    %146 = vmatpush2.msra.mxu0 0.0
    %147 = vmatprep.subr.mxu0 0.0
    %148 = vmatpush2.msra.mxu0 0.0
    %149 = vmatprep.subr.mxu0 0.0
    %150 = vmatpush2.msra.mxu0 0.0
    %151 = vmatprep.subr.mxu0 0.0
    %152 = vmatpush2.msra.mxu0 0.0
    %153 = vmatprep.subr.mxu0 0.0
    %154 = vmatpush2.msra.mxu0 0.0
    %155 = vmatprep.subr.mxu0 0.0
    %156 = vmatpush2.msra.mxu0 0.0
    %157 = vmatprep.subr.mxu0 0.0
    %158 = vmatpush2.msra.mxu0 0.0
    %159 = vmatprep.subr.mxu0 0.0
    %160 = vmatpush2.msra.mxu0 0.0
    %161 = vmatprep.subr.mxu0 0.0
    %162 = vmatpush2.msra.mxu0 0.0
    %163 = vmatprep.subr.mxu0 0.0
    %164 = vmatpush2.msra.mxu0 0.0
    %165 = vmatprep.subr.mxu0 0.0
    %166 = vmatpush2.msra.mxu0 0.0
    %167 = vmatprep.subr.mxu0 0.0
    %168 = vmatpush2.msra.mxu0 0.0
    %169 = vmatprep.subr.mxu0 0.0
    %170 = vmatpush2.msra.mxu0 0.0
    %171 = vmatprep.subr.mxu0 0.0
    %172 = vmatpush2.msra.mxu0 0.0
    %173 = vmatprep.subr.mxu0 0.0
    %174 = vmatpush2.msra.mxu0 0.0
    %175 = vmatprep.subr.mxu0 0.0
    %176 = vmatpush2.msra.mxu0 0.0
    %177 = vmatprep.mubr.f32.mxu0 0.0
    %178 = vmatmul.mubr.f32.gmra.mxu0 %v111
    %v179 = vpop.f32.mrf.mxu0
    %v180 = vadd.f32 %v107, %v179
    %v181 = vpop.f32.mrf.mxu0
    %182 = vdwg.mxu0
    %v183 = vmax.f32 %v180, 0.0
    %v184 = vld [vmem:[#allocation7] sm:$0xff]
    %v185 = vld [vmem:[#allocation7 + $0x8] sm:$0xff]
    %v186 = vld [vmem:[#allocation7 + $0x10] sm:$0xff]
    %v187 = vld [vmem:[#allocation7 + $0x18] sm:$0xff]
    %v188 = vld [vmem:[#allocation7 + $0x20] sm:$0xff]
    %v189 = vld [vmem:[#allocation7 + $0x28] sm:$0xff]
    %v190 = vld [vmem:[#allocation7 + $0x30] sm:$0xff]
    %v191 = vld [vmem:[#allocation7 + $0x38] sm:$0xff]
    %v192 = vld [vmem:[#allocation7 + $0x40] sm:$0xff]
    %v193 = vld [vmem:[#allocation7 + $0x48] sm:$0xff]
    %v194 = vld [vmem:[#allocation7 + $0x50] sm:$0xff]
    %v195 = vld [vmem:[#allocation7 + $0x58] sm:$0xff]
    %v196 = vld [vmem:[#allocation7 + $0x60] sm:$0xff]
    %v197 = vld [vmem:[#allocation7 + $0x68] sm:$0xff]
    %v198 = vld [vmem:[#allocation7 + $0x70] sm:$0xff]
    %v199 = vld [vmem:[#allocation7 + $0x78] sm:$0xff]
    %v200 = vld [vmem:[%s4] sm:$0x1]
    %v202 = vlaneseq
    %v203 = vshrl.u32 %v202, 7
    %v204 = vsub.s32 0, %v203
    %v205 = vrot.slane %v200, %v204
    %207 = vmatprep.subr.mxu0 0.0
    %208 = vmatpush1.msra.mxu0 %v199
    %209 = vmatprep.subr.mxu0 0.0
    %210 = vmatpush1.msra.mxu0 %v198
    %211 = vmatprep.subr.mxu0 0.0
    %212 = vmatpush1.msra.mxu0 %v197
    %213 = vmatprep.subr.mxu0 0.0
    %214 = vmatpush1.msra.mxu0 %v196
    %215 = vmatprep.subr.mxu0 0.0
    %216 = vmatpush1.msra.mxu0 %v195
    %217 = vmatprep.subr.mxu0 0.0
    %218 = vmatpush1.msra.mxu0 %v194
    %219 = vmatprep.subr.mxu0 0.0
    %220 = vmatpush1.msra.mxu0 %v193
    %221 = vmatprep.subr.mxu0 0.0
    %222 = vmatpush1.msra.mxu0 %v192
    %223 = vmatprep.subr.mxu0 0.0
    %224 = vmatpush1.msra.mxu0 %v191
    %225 = vmatprep.subr.mxu0 0.0
    %226 = vmatpush1.msra.mxu0 %v190
    %227 = vmatprep.subr.mxu0 0.0
    %228 = vmatpush1.msra.mxu0 %v189
    %229 = vmatprep.subr.mxu0 0.0
    %230 = vmatpush1.msra.mxu0 %v188
    %231 = vmatprep.subr.mxu0 0.0
    %232 = vmatpush1.msra.mxu0 %v187
    %233 = vmatprep.subr.mxu0 0.0
    %234 = vmatpush1.msra.mxu0 %v186
    %235 = vmatprep.subr.mxu0 0.0
    %236 = vmatpush1.msra.mxu0 %v185
    %237 = vmatprep.subr.mxu0 0.0
    %238 = vmatpush1.msra.mxu0 %v184
    %239 = vmatprep.subr.mxu0 0.0
    %240 = vmatpush2.msra.mxu0 0.0
    %241 = vmatprep.subr.mxu0 0.0
    %242 = vmatpush2.msra.mxu0 0.0
    %243 = vmatprep.subr.mxu0 0.0
    %244 = vmatpush2.msra.mxu0 0.0
    %245 = vmatprep.subr.mxu0 0.0
    %246 = vmatpush2.msra.mxu0 0.0
    %247 = vmatprep.subr.mxu0 0.0
    %248 = vmatpush2.msra.mxu0 0.0
    %249 = vmatprep.subr.mxu0 0.0
    %250 = vmatpush2.msra.mxu0 0.0
    %251 = vmatprep.subr.mxu0 0.0
    %252 = vmatpush2.msra.mxu0 0.0
    %253 = vmatprep.subr.mxu0 0.0
    %254 = vmatpush2.msra.mxu0 0.0
    %255 = vmatprep.subr.mxu0 0.0
    %256 = vmatpush2.msra.mxu0 0.0
    %257 = vmatprep.subr.mxu0 0.0
    %258 = vmatpush2.msra.mxu0 0.0
    %259 = vmatprep.subr.mxu0 0.0
    %260 = vmatpush2.msra.mxu0 0.0
    %261 = vmatprep.subr.mxu0 0.0
    %262 = vmatpush2.msra.mxu0 0.0
    %263 = vmatprep.subr.mxu0 0.0
    %264 = vmatpush2.msra.mxu0 0.0
    %265 = vmatprep.subr.mxu0 0.0
    %266 = vmatpush2.msra.mxu0 0.0
    %267 = vmatprep.subr.mxu0 0.0
    %268 = vmatpush2.msra.mxu0 0.0
    %269 = vmatprep.subr.mxu0 0.0
    %270 = vmatpush2.msra.mxu0 0.0
    %271 = vmatprep.mubr.f32.mxu0 0.0
    %272 = vmatmul.mubr.f32.gmra.mxu0 %v183
    %v273 = vpop.f32.mrf.mxu0
    %v274 = vadd.f32 %v205, %v273
    %v275 = vpop.f32.mrf.mxu0
    %276 = vdwg.mxu0
    %v277 = vmax.f32 %v274, 0.0
    %v278 = vld [vmem:[#allocation8] sm:$0xff]
    %v279 = vld [vmem:[#allocation8 + $0x8] sm:$0xff]
    %v280 = vld [vmem:[#allocation8 + $0x10] sm:$0xff]
    %v281 = vld [vmem:[#allocation8 + $0x18] sm:$0xff]
    %v282 = vld [vmem:[#allocation8 + $0x20] sm:$0xff]
    %v283 = vld [vmem:[#allocation8 + $0x28] sm:$0xff]
    %v284 = vld [vmem:[#allocation8 + $0x30] sm:$0xff]
    %v285 = vld [vmem:[#allocation8 + $0x38] sm:$0xff]
    %v286 = vld [vmem:[#allocation8 + $0x40] sm:$0xff]
    %v287 = vld [vmem:[#allocation8 + $0x48] sm:$0xff]
    %v288 = vld [vmem:[#allocation8 + $0x50] sm:$0xff]
    %v289 = vld [vmem:[#allocation8 + $0x58] sm:$0xff]
    %v290 = vld [vmem:[#allocation8 + $0x60] sm:$0xff]
    %v291 = vld [vmem:[#allocation8 + $0x68] sm:$0xff]
    %v292 = vld [vmem:[#allocation8 + $0x70] sm:$0xff]
    %v293 = vld [vmem:[#allocation8 + $0x78] sm:$0xff]
    %v294 = vld [vmem:[%s6] sm:$0x1]
    %v296 = vlaneseq
    %v297 = vshrl.u32 %v296, 7
    %v298 = vsub.s32 0, %v297
    %v299 = vrot.slane %v294, %v298
    %301 = vmatprep.subr.mxu0 0.0
    %302 = vmatpush1.msra.mxu0 %v293
    %303 = vmatprep.subr.mxu0 0.0
    %304 = vmatpush1.msra.mxu0 %v292
    %305 = vmatprep.subr.mxu0 0.0
    %306 = vmatpush1.msra.mxu0 %v291
    %307 = vmatprep.subr.mxu0 0.0
    %308 = vmatpush1.msra.mxu0 %v290
    %309 = vmatprep.subr.mxu0 0.0
    %310 = vmatpush1.msra.mxu0 %v289
    %311 = vmatprep.subr.mxu0 0.0
    %312 = vmatpush1.msra.mxu0 %v288
    %313 = vmatprep.subr.mxu0 0.0
    %314 = vmatpush1.msra.mxu0 %v287
    %315 = vmatprep.subr.mxu0 0.0
    %316 = vmatpush1.msra.mxu0 %v286
    %317 = vmatprep.subr.mxu0 0.0
    %318 = vmatpush1.msra.mxu0 %v285
    %319 = vmatprep.subr.mxu0 0.0
    %320 = vmatpush1.msra.mxu0 %v284
    %321 = vmatprep.subr.mxu0 0.0
    %322 = vmatpush1.msra.mxu0 %v283
    %323 = vmatprep.subr.mxu0 0.0
    %324 = vmatpush1.msra.mxu0 %v282
    %325 = vmatprep.subr.mxu0 0.0
    %326 = vmatpush1.msra.mxu0 %v281
    %327 = vmatprep.subr.mxu0 0.0
    %328 = vmatpush1.msra.mxu0 %v280
    %329 = vmatprep.subr.mxu0 0.0
    %330 = vmatpush1.msra.mxu0 %v279
    %331 = vmatprep.subr.mxu0 0.0
    %332 = vmatpush1.msra.mxu0 %v278
    %333 = vmatprep.subr.mxu0 0.0
    %334 = vmatpush2.msra.mxu0 0.0
    %335 = vmatprep.subr.mxu0 0.0
    %336 = vmatpush2.msra.mxu0 0.0
    %337 = vmatprep.subr.mxu0 0.0
    %338 = vmatpush2.msra.mxu0 0.0
    %339 = vmatprep.subr.mxu0 0.0
    %340 = vmatpush2.msra.mxu0 0.0
    %341 = vmatprep.subr.mxu0 0.0
    %342 = vmatpush2.msra.mxu0 0.0
    %343 = vmatprep.subr.mxu0 0.0
    %344 = vmatpush2.msra.mxu0 0.0
    %345 = vmatprep.subr.mxu0 0.0
    %346 = vmatpush2.msra.mxu0 0.0
    %347 = vmatprep.subr.mxu0 0.0
    %348 = vmatpush2.msra.mxu0 0.0
    %349 = vmatprep.subr.mxu0 0.0
    %350 = vmatpush2.msra.mxu0 0.0
    %351 = vmatprep.subr.mxu0 0.0
    %352 = vmatpush2.msra.mxu0 0.0
    %353 = vmatprep.subr.mxu0 0.0
    %354 = vmatpush2.msra.mxu0 0.0
    %355 = vmatprep.subr.mxu0 0.0
    %356 = vmatpush2.msra.mxu0 0.0
    %357 = vmatprep.subr.mxu0 0.0
    %358 = vmatpush2.msra.mxu0 0.0
    %359 = vmatprep.subr.mxu0 0.0
    %360 = vmatpush2.msra.mxu0 0.0
    %361 = vmatprep.subr.mxu0 0.0
    %362 = vmatpush2.msra.mxu0 0.0
    %363 = vmatprep.subr.mxu0 0.0
    %364 = vmatpush2.msra.mxu0 0.0
    %365 = vmatprep.mubr.f32.mxu0 0.0
    %366 = vmatmul.mubr.f32.gmra.mxu0 %v277
    %v367 = vpop.f32.mrf.mxu0
    %v368 = vadd.f32 %v299, %v367
    %v369 = vpop.f32.mrf.mxu0
    %370 = vdwg.mxu0
    %v371 = vmax.f32 %v368, 0.0
    %v372 = vld [vmem:[#allocation10] sm:$0xff]
    %v373 = vld [vmem:[#allocation10 + $0x8] sm:$0xff]
    %v374 = vld [vmem:[#allocation10 + $0x10] sm:$0xff]
    %v375 = vld [vmem:[#allocation10 + $0x18] sm:$0xff]
    %v376 = vld [vmem:[#allocation10 + $0x20] sm:$0xff]
    %v377 = vld [vmem:[#allocation10 + $0x28] sm:$0xff]
    %v378 = vld [vmem:[#allocation10 + $0x30] sm:$0xff]
    %v379 = vld [vmem:[#allocation10 + $0x38] sm:$0xff]
    %v380 = vld [vmem:[#allocation10 + $0x40] sm:$0xff]
    %v381 = vld [vmem:[#allocation10 + $0x48] sm:$0xff]
    %v382 = vld [vmem:[#allocation10 + $0x50] sm:$0xff]
    %v383 = vld [vmem:[#allocation10 + $0x58] sm:$0xff]
    %v384 = vld [vmem:[#allocation10 + $0x60] sm:$0xff]
    %v385 = vld [vmem:[#allocation10 + $0x68] sm:$0xff]
    %v386 = vld [vmem:[#allocation10 + $0x70] sm:$0xff]
    %v387 = vld [vmem:[#allocation10 + $0x78] sm:$0xff]
    %v388 = vld [vmem:[%s8] sm:$0x1]
    %v390 = vlaneseq
    %v391 = vshrl.u32 %v390, 7
    %v392 = vsub.s32 0, %v391
    %v393 = vrot.slane %v388, %v392
    %395 = vmatprep.subr.mxu0 0.0
    %396 = vmatpush1.msra.mxu0 %v387
    %397 = vmatprep.subr.mxu0 0.0
    %398 = vmatpush1.msra.mxu0 %v386
    %399 = vmatprep.subr.mxu0 0.0
    %400 = vmatpush1.msra.mxu0 %v385
    %401 = vmatprep.subr.mxu0 0.0
    %402 = vmatpush1.msra.mxu0 %v384
    %403 = vmatprep.subr.mxu0 0.0
    %404 = vmatpush1.msra.mxu0 %v383
    %405 = vmatprep.subr.mxu0 0.0
    %406 = vmatpush1.msra.mxu0 %v382
    %407 = vmatprep.subr.mxu0 0.0
    %408 = vmatpush1.msra.mxu0 %v381
    %409 = vmatprep.subr.mxu0 0.0
    %410 = vmatpush1.msra.mxu0 %v380
    %411 = vmatprep.subr.mxu0 0.0
    %412 = vmatpush1.msra.mxu0 %v379
    %413 = vmatprep.subr.mxu0 0.0
    %414 = vmatpush1.msra.mxu0 %v378
    %415 = vmatprep.subr.mxu0 0.0
    %416 = vmatpush1.msra.mxu0 %v377
    %417 = vmatprep.subr.mxu0 0.0
    %418 = vmatpush1.msra.mxu0 %v376
    %419 = vmatprep.subr.mxu0 0.0
    %420 = vmatpush1.msra.mxu0 %v375
    %421 = vmatprep.subr.mxu0 0.0
    %422 = vmatpush1.msra.mxu0 %v374
    %423 = vmatprep.subr.mxu0 0.0
    %424 = vmatpush1.msra.mxu0 %v373
    %425 = vmatprep.subr.mxu0 0.0
    %426 = vmatpush1.msra.mxu0 %v372
    %427 = vmatprep.subr.mxu0 0.0
    %428 = vmatpush2.msra.mxu0 0.0
    %429 = vmatprep.subr.mxu0 0.0
    %430 = vmatpush2.msra.mxu0 0.0
    %431 = vmatprep.subr.mxu0 0.0
    %432 = vmatpush2.msra.mxu0 0.0
    %433 = vmatprep.subr.mxu0 0.0
    %434 = vmatpush2.msra.mxu0 0.0
    %435 = vmatprep.subr.mxu0 0.0
    %436 = vmatpush2.msra.mxu0 0.0
    %437 = vmatprep.subr.mxu0 0.0
    %438 = vmatpush2.msra.mxu0 0.0
    %439 = vmatprep.subr.mxu0 0.0
    %440 = vmatpush2.msra.mxu0 0.0
    %441 = vmatprep.subr.mxu0 0.0
    %442 = vmatpush2.msra.mxu0 0.0
    %443 = vmatprep.subr.mxu0 0.0
    %444 = vmatpush2.msra.mxu0 0.0
    %445 = vmatprep.subr.mxu0 0.0
    %446 = vmatpush2.msra.mxu0 0.0
    %447 = vmatprep.subr.mxu0 0.0
    %448 = vmatpush2.msra.mxu0 0.0
    %449 = vmatprep.subr.mxu0 0.0
    %450 = vmatpush2.msra.mxu0 0.0
    %451 = vmatprep.subr.mxu0 0.0
    %452 = vmatpush2.msra.mxu0 0.0
    %453 = vmatprep.subr.mxu0 0.0
    %454 = vmatpush2.msra.mxu0 0.0
    %455 = vmatprep.subr.mxu0 0.0
    %456 = vmatpush2.msra.mxu0 0.0
    %457 = vmatprep.subr.mxu0 0.0
    %458 = vmatpush2.msra.mxu0 0.0
    %459 = vmatprep.mubr.f32.mxu0 0.0
    %460 = vmatmul.mubr.f32.gmra.mxu0 %v371
    %v461 = vpop.f32.mrf.mxu0
    %v462 = vadd.f32 %v393, %v461
    %v463 = vpop.f32.mrf.mxu0
    %464 = vdwg.mxu0
    %465 = vst [vmem:[#allocation11] sm:$0xff] %v462
    // Predicated region
    $region58: #{_mlp_gaussian_forward.1} parent=1 // pred_check
      _
    $region59: #{_mlp_gaussian_forward.1} parent=1 // pred_check_branch
      %467 = sbr.rel (0) target = $region61
    $region60: #{_mlp_gaussian_forward.1} parent=1 // pred_region
      %s469 = ssub.s32 128, 128
      %470 = vsyncadd [#allocation4], %s469
      %s472 = sshll.u32 [#allocation11], 4
      %s473 = int_to_ptr.vmem [resolvable:$true] %s472
      %475 = dma.vmem_to_hbm [thread:$0]  %s473, 128, %s9, [#allocation4]
    $region61: #{_mlp_gaussian_forward.1} parent=1 // pred_fallthru
      _
    // Predicated region
    $region62: #{_mlp_gaussian_forward.1} parent=1 // pred_check
      _
    $region63: #{_mlp_gaussian_forward.1} parent=1 // pred_check_branch
      %477 = sbr.rel (0) target = $region65
    $region64: #{_mlp_gaussian_forward.1} parent=1 // pred_region
      %478 = dma.done [#allocation4], 128
    $region65: #{_mlp_gaussian_forward.1} parent=1 // pred_fallthru
      _
    %479 = vsyncpa [#allocation3], 1
    %480 = vsyncpa [#allocation6], 1
    %481 = vsyncpa [#allocation9], 1
    %482 = vsyncpa [#allocation4], 1

</llo_original>
